<compile_context>
chip_gen: v6e
topology: v6e:2x2x1
jax: 0.10.0
libtpu: 0.0.40
codegen_flags: <defaults>
</compile_context>

<pallas_src>
import math
from functools import partial

import numpy as np
import jax
import jax.numpy as jnp
from jax import lax
from jax.experimental import pallas as pl
from jax.experimental.pallas import tpu as pltpu


# ----------------------------- in-kernel helpers -----------------------------

def _layernorm(x, w, b, eps=1e-5):
    # x: (N, C), w/b: (1, C)
    mu = jnp.mean(x, axis=-1, keepdims=True)
    var = jnp.mean(jnp.square(x - mu), axis=-1, keepdims=True)
    return (x - mu) * lax.rsqrt(var + eps) * w + b


# ------------------------------ fused Block kernel ----------------------------

def rwkv_block_kernel(x_ref, vec_ref, att_wnx_ref, ffn_wnx_ref, op_ref, o_ref,
                      *, B, T):
    f32 = jnp.float32
    x = x_ref[...]                                   # (B*T, C) residual stream
    BT, C = x.shape
    A = att_wnx_ref.shape[1] // 3                    # attention size (== C here)
    H = ffn_wnx_ref.shape[1] - C                     # ffn hidden size

    # Packed vector parameters: rows = [ln1_w, ln1_b, ln2_w, ln2_b, -exp(decay), first]
    ln1w = vec_ref[0:1, :]
    ln1b = vec_ref[1:2, :]
    ln2w = vec_ref[2:3, :]
    ln2b = vec_ref[3:4, :]
    w = vec_ref[4:5, :]                              # (1, A) = -exp(time_decay)
    u = vec_ref[5:6, :]                              # (1, A) = time_first
    att_wo = op_ref[0:A, :]                          # (A, C)
    ffn_wv = op_ref[A:A + H, :]                      # (H, C)

    # Hoisted segment-shift mask: nn.ZeroPad2d((0,0,1,-1)) per batch segment
    # on a (B*T, C) slab -> row b*T+0 zeroed, row b*T+t <- row b*T+t-1.
    row = lax.broadcasted_iota(jnp.int32, (BT, C), 0)
    first_row = (row % T) == 0

    def seg_shift(z):
        return jnp.where(first_row, 0.0, pltpu.roll(z, shift=1, axis=0))

    # ---------------- TimeMix branch: x + att(ln1(x)) ----------------
    xn = _layernorm(x, ln1w, ln1b)
    xx = seg_shift(xn)
    # One merged matmul: [xn | xx] (BT, 2C) @ (2C, 3A); time-mix interpolation
    # and K/V/R projections are folded into the weight at param-build time.
    kvr = jnp.dot(jnp.concatenate([xn, xx], axis=1), att_wnx_ref[...],
                  preferred_element_type=f32)        # (BT, 3A)
    k = kvr[:, 0:A]
    v = kvr[:, A:2 * A]
    sr = jax.nn.sigmoid(kvr[:, 2 * A:3 * A])

    # WKV recurrence: both batch segments packed into one (1, B*A) state,
    # so the serial exp chain is only T steps. Re-layout k/v once.
    k_t = jnp.concatenate([k[b * T:(b + 1) * T, :] for b in range(B)], axis=1)  # (T, B*A)
    v_t = jnp.concatenate([v[b * T:(b + 1) * T, :] for b in range(B)], axis=1)  # (T, B*A)
    wB = jnp.concatenate([w] * B, axis=1)            # (1, B*A)
    uB = jnp.concatenate([u] * B, axis=1)            # (1, B*A)

    aa = jnp.zeros((1, B * A), f32)
    bb = jnp.zeros((1, B * A), f32)
    pp = jnp.full((1, B * A), -1e38, f32)
    ys = []
    for t in range(T):
        kk = k_t[t:t + 1, :]                         # (1, B*A)
        vv = v_t[t:t + 1, :]
        ww = uB + kk
        p = jnp.maximum(pp, ww)
        e1 = jnp.exp(pp - p)
        e2 = jnp.exp(ww - p)
        num = e1 * aa + e2 * vv
        den = e1 * bb + e2
        ys.append(num * pl.reciprocal(den, approx=True))
        ww2 = pp + wB
        p2 = jnp.maximum(ww2, kk)
        e1b = jnp.exp(ww2 - p2)
        e2b = jnp.exp(kk - p2)
        aa = e1b * aa + e2b * vv
        bb = e1b * bb + e2b
        pp = p2

    y_pack = jnp.concatenate(ys, axis=0)             # (T, B*A)
    y = jnp.concatenate([y_pack[:, b * A:(b + 1) * A] for b in range(B)],
                        axis=0)                      # (B*T, A)

    h = x + jnp.dot(sr * y, att_wo, preferred_element_type=f32)

    # ---------------- ChannelMix branch: h + ffn(ln2(h)) ----------------
    xn2 = _layernorm(h, ln2w, ln2b)
    xx2 = seg_shift(xn2)
    hr = jnp.dot(jnp.concatenate([xn2, xx2], axis=1), ffn_wnx_ref[...],
                 preferred_element_type=f32)         # (BT, H+C)
    kh = jnp.square(jnp.maximum(hr[:, 0:H], 0.0))
    r2 = jax.nn.sigmoid(hr[:, H:])
    kv = jnp.dot(kh, ffn_wv, preferred_element_type=f32)
    o_ref[...] = h + r2 * kv


# --------------------------------- wrapper ------------------------------------

@jax.jit
def block_forward(x, p):
    B, T, C = x.shape
    x2d = x.reshape(B * T, C)
    out2d = pl.pallas_call(
        partial(rwkv_block_kernel, B=B, T=T),
        out_shape=jax.ShapeDtypeStruct((B * T, C), jnp.float32),
    )(x2d, p['vec'], p['att_wnx'], p['ffn_wnx'], p['op'])
    return out2d.reshape(B, T, C)


# ----------------------- deterministic parameter init -------------------------

def make_params(n_embd, n_layer, layer_id, attn_sz, hidden_sz, key):
    f32 = jnp.float32
    C, A, H = n_embd, attn_sz, hidden_sz
    assert A == C, "packed vector-parameter slab assumes dim_att == 0 (attn_sz == n_embd)"
    r0 = layer_id / (n_layer - 1)          # ratio_0_to_1
    r1 = 1.0 - layer_id / n_layer          # ratio_1_to_almost0

    i = jnp.arange(C, dtype=f32) / C       # x[0,0,i] = i / n_embd
    att_tmk = jnp.power(i, r1).reshape(1, C)
    att_tmv = (jnp.power(i, r1) + 0.3 * r0).reshape(1, C)
    att_tmr = jnp.power(i, 0.5 * r1).reshape(1, C)
    ffn_tm = jnp.power(i, r1).reshape(1, C)

    h = jnp.arange(A, dtype=f32)
    decay = (-5.0 + 8.0 * jnp.power(h / (A - 1), 0.7 + 1.3 * r0)).reshape(1, A)
    zigzag = jnp.array([((j + 1) % 3 - 1) * 0.5 for j in range(A)], dtype=f32)
    first = (jnp.ones(A, f32) * math.log(0.3) + zigzag).reshape(1, A)

    ks = jax.random.split(key, 7)
    scale = 0.1
    att_wk = jax.random.normal(ks[0], (C, A), f32) * scale
    att_wv = jax.random.normal(ks[1], (C, A), f32) * scale
    att_wr = jax.random.normal(ks[2], (C, A), f32) * scale
    att_wo = jax.random.normal(ks[3], (A, C), f32) * scale
    ffn_wk = jax.random.normal(ks[4], (C, H), f32) * scale
    ffn_wr = jax.random.normal(ks[5], (C, C), f32) * scale
    ffn_wv = jax.random.normal(ks[6], (H, C), f32) * scale

    ln1_w = jnp.ones((1, C), f32); ln1_b = jnp.zeros((1, C), f32)
    ln2_w = jnp.ones((1, C), f32); ln2_b = jnp.zeros((1, C), f32)

    # Fold the time-mix interpolation into the projection weights:
    #   (xn*tm + xx*(1-tm)) @ W  ==  xn @ (tm_col*W) + xx @ ((1-tm)_col*W)
    def fold(tm, w):
        return tm.reshape(C, 1) * w, (1.0 - tm).reshape(C, 1) * w

    kn, kx = fold(att_tmk, att_wk)
    vn, vx = fold(att_tmv, att_wv)
    rn, rx = fold(att_tmr, att_wr)
    fkn, fkx = fold(ffn_tm, ffn_wk)
    frn, frx = fold(ffn_tm, ffn_wr)

    att_wn = jnp.concatenate([kn, vn, rn], axis=1)    # (C, 3A)
    att_wx = jnp.concatenate([kx, vx, rx], axis=1)    # (C, 3A)
    ffn_wn = jnp.concatenate([fkn, frn], axis=1)      # (C, H+C)
    ffn_wx = jnp.concatenate([fkx, frx], axis=1)      # (C, H+C)

    params = {
        # ---- base (reference) parameters ----
        'ln1_w': ln1_w, 'ln1_b': ln1_b, 'ln2_w': ln2_w, 'ln2_b': ln2_b,
        'att_tmk': att_tmk, 'att_tmv': att_tmv, 'att_tmr': att_tmr,
        'att_decay': decay, 'att_first': first,
        'att_wk': att_wk, 'att_wv': att_wv, 'att_wr': att_wr, 'att_wo': att_wo,
        'ffn_tmk': ffn_tm, 'ffn_tmr': ffn_tm,
        'ffn_wk': ffn_wk, 'ffn_wr': ffn_wr, 'ffn_wv': ffn_wv,
        # ---- packed / folded parameters consumed by the kernel ----
        # vector slab: [ln1_w, ln1_b, ln2_w, ln2_b, -exp(decay), time_first]
        'vec': jnp.concatenate(
            [ln1_w, ln1_b, ln2_w, ln2_b, -jnp.exp(decay), first], axis=0),  # (6, C)
        'att_wnx': jnp.concatenate([att_wn, att_wx], axis=0),               # (2C, 3A)
        'ffn_wnx': jnp.concatenate([ffn_wn, ffn_wx], axis=0),               # (2C, H+C)
        'op': jnp.concatenate([att_wo, ffn_wv], axis=0),                    # (A+H, C)
    }
    return params


# ------------------------------ pure-numpy reference --------------------------

def block_reference(x, p):
    x = np.asarray(x, np.float32)
    p = {k: np.asarray(v, np.float32) for k, v in p.items()}

    def ln(z, w, b):
        mu = z.mean(-1, keepdims=True)
        var = ((z - mu) ** 2).mean(-1, keepdims=True)
        return (z - mu) / np.sqrt(var + 1e-5) * w + b

    def tshift(z):
        out = np.zeros_like(z)
        out[:, 1:, :] = z[:, :-1, :]
        return out

    def sigmoid(z):
        return 1.0 / (1.0 + np.exp(-z))

    B, T, C = x.shape
    # --- att branch ---
    xn = ln(x, p['ln1_w'], p['ln1_b'])
    xx = tshift(xn)
    xk = xn * p['att_tmk'] + xx * (1 - p['att_tmk'])
    xv = xn * p['att_tmv'] + xx * (1 - p['att_tmv'])
    xr = xn * p['att_tmr'] + xx * (1 - p['att_tmr'])
    k = xk @ p['att_wk']
    v = xv @ p['att_wv']
    sr = sigmoid(xr @ p['att_wr'])
    A = k.shape[-1]
    w = -np.exp(p['att_decay'][0])
    u = p['att_first'][0]
    y = np.zeros((B, T, A), np.float32)
    for b in range(B):
        aa = np.zeros(A, np.float32)
        bb = np.zeros(A, np.float32)
        pp = np.full(A, -1e38, np.float32)
        for t in range(T):
            kk, vv = k[b, t], v[b, t]
            ww = u + kk
            pm = np.maximum(pp, ww)
            e1, e2 = np.exp(pp - pm), np.exp(ww - pm)
            y[b, t] = (e1 * aa + e2 * vv) / (e1 * bb + e2)
            ww = pp + w
            pm = np.maximum(ww, kk)
            e1, e2 = np.exp(ww - pm), np.exp(kk - pm)
            aa = e1 * aa + e2 * vv
            bb = e1 * bb + e2
            pp = pm
    x = x + (sr * y) @ p['att_wo']
    # --- ffn branch ---
    xn = ln(x, p['ln2_w'], p['ln2_b'])
    xx = tshift(xn)
    xk = xn * p['ffn_tmk'] + xx * (1 - p['ffn_tmk'])
    xr = xn * p['ffn_tmr'] + xx * (1 - p['ffn_tmr'])
    kk = np.maximum(xk @ p['ffn_wk'], 0.0) ** 2
    kv = kk @ p['ffn_wv']
    return x + sigmoid(xr @ p['ffn_wr']) * kv


# ----------------------------------- main --------------------------------------

if __name__ == "__main__":
    B, T = 2, 8
    n_embd, n_layer, layer_id = 32, 4, 1
    attn_sz = n_embd          # dim_att == 0
    hidden_sz = 4 * n_embd    # dim_ffn == 0
    # TODO(synk): ln0 / pre_ffn (layer_id == 0) and the tiny-attention branch
    # (tiny_att_dim > 0) are disabled for this config and not translated.

    key = jax.random.PRNGKey(0)
    k_x, k_p = jax.random.split(key)
    x = jax.random.normal(k_x, (B, T, n_embd), jnp.float32)
    params = make_params(n_embd, n_layer, layer_id, attn_sz, hidden_sz, k_p)

    out = jax.block_until_ready(block_forward(x, params))

    ref = block_reference(x, params)
    # Tolerance relaxed to 1e-3 because of pl.reciprocal(approx=True) (~12-bit)
    # in the WKV denominator; everything else stays f32.
    np.testing.assert_allclose(np.asarray(out), ref, rtol=1e-3, atol=1e-3)

    print("KERNEL_OK")
</pallas_src>

<mosaic_0001>
module attributes {stable_mosaic.version = 11 : i64} {
  func.func @rwkv_block_kernel(%arg0: memref<16x32xf32, #tpu.memory_space<vmem>>, %arg1: memref<6x32xf32, #tpu.memory_space<vmem>>, %arg2: memref<64x96xf32, #tpu.memory_space<vmem>>, %arg3: memref<64x160xf32, #tpu.memory_space<vmem>>, %arg4: memref<160x32xf32, #tpu.memory_space<vmem>>, %arg5: memref<16x32xf32, #tpu.memory_space<vmem>>) attributes {dimension_semantics = [], scalar_prefetch = 0 : i64, scratch_operands = 0 : i64, tpu.core_type = #tpu.core_type<tc>} {
    %c0 = arith.constant 0 : index
    %c0_0 = arith.constant 0 : index
    %0 = vector.load %arg0[%c0, %c0_0] : memref<16x32xf32, #tpu.memory_space<vmem>>, vector<16x32xf32>
    %c0_1 = arith.constant 0 : index
    %c0_2 = arith.constant 0 : index
    %1 = vector.load %arg1[%c0_1, %c0_2] : memref<6x32xf32, #tpu.memory_space<vmem>>, vector<1x32xf32>
    %c1 = arith.constant 1 : index
    %c0_3 = arith.constant 0 : index
    %2 = vector.load %arg1[%c1, %c0_3] : memref<6x32xf32, #tpu.memory_space<vmem>>, vector<1x32xf32>
    %c2 = arith.constant 2 : index
    %c0_4 = arith.constant 0 : index
    %3 = vector.load %arg1[%c2, %c0_4] : memref<6x32xf32, #tpu.memory_space<vmem>>, vector<1x32xf32>
    %c3 = arith.constant 3 : index
    %c0_5 = arith.constant 0 : index
    %4 = vector.load %arg1[%c3, %c0_5] : memref<6x32xf32, #tpu.memory_space<vmem>>, vector<1x32xf32>
    %c4 = arith.constant 4 : index
    %c0_6 = arith.constant 0 : index
    %5 = vector.load %arg1[%c4, %c0_6] : memref<6x32xf32, #tpu.memory_space<vmem>>, vector<1x32xf32>
    %c5 = arith.constant 5 : index
    %c0_7 = arith.constant 0 : index
    %6 = vector.load %arg1[%c5, %c0_7] : memref<6x32xf32, #tpu.memory_space<vmem>>, vector<1x32xf32>
    %c0_8 = arith.constant 0 : index
    %c0_9 = arith.constant 0 : index
    %7 = vector.load %arg4[%c0_8, %c0_9] : memref<160x32xf32, #tpu.memory_space<vmem>>, vector<32x32xf32>
    %c32 = arith.constant 32 : index
    %c0_10 = arith.constant 0 : index
    %8 = vector.load %arg4[%c32, %c0_10] : memref<160x32xf32, #tpu.memory_space<vmem>>, vector<128x32xf32>
    %9 = tpu.iota {dimensions = array<i32: 0>} : vector<16x32xi32>
    %c8_i32 = arith.constant 8 : i32
    %c0_i32 = arith.constant 0 : i32
    %10 = arith.cmpi eq, %c8_i32, %c0_i32 : i32
    %c1_i32 = arith.constant 1 : i32
    %11 = arith.select %10, %c1_i32, %c8_i32 : i32
    %12 = vector.broadcast %11 : i32 to vector<16x32xi32>
    %13 = arith.remsi %9, %12 : vector<16x32xi32>
    %c0_i32_11 = arith.constant 0 : i32
    %14 = vector.broadcast %c0_i32_11 : i32 to vector<16x32xi32>
    %15 = arith.cmpi ne, %13, %14 : vector<16x32xi32>
    %c0_i32_12 = arith.constant 0 : i32
    %16 = vector.broadcast %c0_i32_12 : i32 to vector<16x32xi32>
    %17 = arith.cmpi slt, %13, %16 : vector<16x32xi32>
    %c0_i32_13 = arith.constant 0 : i32
    %18 = arith.cmpi slt, %11, %c0_i32_13 : i32
    %19 = vector.broadcast %18 : i1 to vector<16x32xi1>
    %20 = vector.broadcast %19 : vector<16x32xi1> to vector<16x32xi1>
    %21 = arith.xori %17, %20 : vector<16x32xi1>
    %22 = arith.andi %21, %15 : vector<16x32xi1>
    %23 = vector.broadcast %11 : i32 to vector<16x32xi32>
    %24 = arith.addi %13, %23 : vector<16x32xi32>
    %25 = arith.select %22, %24, %13 : vector<16x32xi1>, vector<16x32xi32>
    %c0_i32_14 = arith.constant 0 : i32
    %26 = vector.broadcast %c0_i32_14 : i32 to vector<16x32xi32>
    %27 = arith.cmpi eq, %25, %26 : vector<16x32xi32>
    %cst = arith.constant dense<0.000000e+00> : vector<16xf32>
    %28 = vector.multi_reduction <add>, %0, %cst [1] : vector<16x32xf32> to vector<16xf32>
    %29 = vector.shape_cast %28 : vector<16xf32> to vector<16x1xf32>
    %cst_15 = arith.constant 3.200000e+01 : f32
    %30 = vector.broadcast %cst_15 : f32 to vector<16x1xf32>
    %31 = arith.divf %29, %30 : vector<16x1xf32>
    %32 = vector.broadcast %31 : vector<16x1xf32> to vector<16x32xf32>
    %33 = arith.subf %0, %32 : vector<16x32xf32>
    %34 = arith.mulf %33, %33 : vector<16x32xf32>
    %cst_16 = arith.constant dense<0.000000e+00> : vector<16xf32>
    %35 = vector.multi_reduction <add>, %34, %cst_16 [1] : vector<16x32xf32> to vector<16xf32>
    %36 = vector.shape_cast %35 : vector<16xf32> to vector<16x1xf32>
    %cst_17 = arith.constant 3.200000e+01 : f32
    %37 = vector.broadcast %cst_17 : f32 to vector<16x1xf32>
    %38 = arith.divf %36, %37 : vector<16x1xf32>
    %39 = vector.broadcast %31 : vector<16x1xf32> to vector<16x32xf32>
    %40 = arith.subf %0, %39 : vector<16x32xf32>
    %cst_18 = arith.constant 9.99999974E-6 : f32
    %41 = vector.broadcast %cst_18 : f32 to vector<16x1xf32>
    %42 = arith.addf %38, %41 : vector<16x1xf32>
    %43 = math.rsqrt %42 : vector<16x1xf32>
    %44 = vector.broadcast %43 : vector<16x1xf32> to vector<16x32xf32>
    %45 = arith.mulf %40, %44 : vector<16x32xf32>
    %46 = vector.broadcast %1 : vector<1x32xf32> to vector<16x32xf32>
    %47 = arith.mulf %45, %46 : vector<16x32xf32>
    %48 = vector.broadcast %2 : vector<1x32xf32> to vector<16x32xf32>
    %49 = arith.addf %47, %48 : vector<16x32xf32>
    %c1_i32_19 = arith.constant 1 : i32
    %50 = tpu.dynamic_rotate %49 by %c1_i32_19 dim 0 : vector<16x32xf32>, i32 -> vector<16x32xf32>
    %cst_20 = arith.constant 0.000000e+00 : f32
    %51 = vector.broadcast %cst_20 : f32 to vector<16x32xf32>
    %52 = arith.select %27, %51, %50 : vector<16x32xi1>, vector<16x32xf32>
    %53 = tpu.concatenate %49, %52 in 1 : vector<16x32xf32>, vector<16x32xf32> -> vector<16x64xf32>
    %c0_21 = arith.constant 0 : index
    %c0_22 = arith.constant 0 : index
    %54 = vector.load %arg2[%c0_21, %c0_22] : memref<64x96xf32, #tpu.memory_space<vmem>>, vector<64x96xf32>
    %cst_23 = arith.constant dense<0.000000e+00> : vector<16x96xf32>
    %55 = tpu.matmul %53, %54, %cst_23 {dimension_numbers = #tpu.dot_dimension_numbers<[1], [0], [0], [1], [0, 0, 1, 1], [], []>} : vector<16x64xf32>, vector<64x96xf32>, vector<16x96xf32> -> vector<16x96xf32>
    %56 = vector.extract_strided_slice %55 {offsets = [0, 0], sizes = [16, 32], strides = [1, 1]} : vector<16x96xf32> to vector<16x32xf32>
    %57 = vector.extract_strided_slice %55 {offsets = [0, 32], sizes = [16, 32], strides = [1, 1]} : vector<16x96xf32> to vector<16x32xf32>
    %58 = vector.extract_strided_slice %55 {offsets = [0, 64], sizes = [16, 32], strides = [1, 1]} : vector<16x96xf32> to vector<16x32xf32>
    %59 = arith.negf %58 : vector<16x32xf32>
    %60 = math.exp %59 : vector<16x32xf32>
    %cst_24 = arith.constant 1.000000e+00 : f32
    %61 = vector.broadcast %cst_24 : f32 to vector<16x32xf32>
    %62 = arith.addf %61, %60 : vector<16x32xf32>
    %63 = arith.divf %61, %62 : vector<16x32xf32>
    %64 = vector.extract_strided_slice %56 {offsets = [0, 0], sizes = [8, 32], strides = [1, 1]} : vector<16x32xf32> to vector<8x32xf32>
    %65 = vector.extract_strided_slice %56 {offsets = [8, 0], sizes = [8, 32], strides = [1, 1]} : vector<16x32xf32> to vector<8x32xf32>
    %66 = tpu.concatenate %64, %65 in 1 : vector<8x32xf32>, vector<8x32xf32> -> vector<8x64xf32>
    %67 = vector.extract_strided_slice %57 {offsets = [0, 0], sizes = [8, 32], strides = [1, 1]} : vector<16x32xf32> to vector<8x32xf32>
    %68 = vector.extract_strided_slice %57 {offsets = [8, 0], sizes = [8, 32], strides = [1, 1]} : vector<16x32xf32> to vector<8x32xf32>
    %69 = tpu.concatenate %67, %68 in 1 : vector<8x32xf32>, vector<8x32xf32> -> vector<8x64xf32>
    %70 = tpu.concatenate %5, %5 in 1 : vector<1x32xf32>, vector<1x32xf32> -> vector<1x64xf32>
    %71 = tpu.concatenate %6, %6 in 1 : vector<1x32xf32>, vector<1x32xf32> -> vector<1x64xf32>
    %cst_25 = arith.constant 0.000000e+00 : f32
    %72 = vector.broadcast %cst_25 : f32 to vector<1x64xf32>
    %cst_26 = arith.constant 0.000000e+00 : f32
    %73 = vector.broadcast %cst_26 : f32 to vector<1x64xf32>
    %cst_27 = arith.constant -9.99999968E+37 : f32
    %74 = vector.broadcast %cst_27 : f32 to vector<1x64xf32>
    %75 = vector.extract_strided_slice %66 {offsets = [0, 0], sizes = [1, 64], strides = [1, 1]} : vector<8x64xf32> to vector<1x64xf32>
    %76 = vector.extract_strided_slice %69 {offsets = [0, 0], sizes = [1, 64], strides = [1, 1]} : vector<8x64xf32> to vector<1x64xf32>
    %77 = arith.addf %71, %75 : vector<1x64xf32>
    %78 = arith.maximumf %74, %77 : vector<1x64xf32>
    %79 = arith.subf %74, %78 : vector<1x64xf32>
    %80 = math.exp %79 : vector<1x64xf32>
    %81 = arith.subf %77, %78 : vector<1x64xf32>
    %82 = math.exp %81 : vector<1x64xf32>
    %83 = arith.mulf %80, %72 : vector<1x64xf32>
    %84 = arith.mulf %82, %76 : vector<1x64xf32>
    %85 = arith.addf %83, %84 : vector<1x64xf32>
    %86 = arith.mulf %80, %73 : vector<1x64xf32>
    %87 = arith.addf %86, %82 : vector<1x64xf32>
    %88 = tpu.reciprocal %87 {approx = true} : vector<1x64xf32> -> vector<1x64xf32>
    %89 = arith.mulf %85, %88 : vector<1x64xf32>
    %90 = arith.addf %74, %70 : vector<1x64xf32>
    %91 = arith.maximumf %90, %75 : vector<1x64xf32>
    %92 = arith.subf %90, %91 : vector<1x64xf32>
    %93 = math.exp %92 : vector<1x64xf32>
    %94 = arith.subf %75, %91 : vector<1x64xf32>
    %95 = math.exp %94 : vector<1x64xf32>
    %96 = arith.mulf %93, %72 : vector<1x64xf32>
    %97 = arith.mulf %95, %76 : vector<1x64xf32>
    %98 = arith.addf %96, %97 : vector<1x64xf32>
    %99 = arith.mulf %93, %73 : vector<1x64xf32>
    %100 = arith.addf %99, %95 : vector<1x64xf32>
    %101 = vector.extract_strided_slice %66 {offsets = [1, 0], sizes = [1, 64], strides = [1, 1]} : vector<8x64xf32> to vector<1x64xf32>
    %102 = vector.extract_strided_slice %69 {offsets = [1, 0], sizes = [1, 64], strides = [1, 1]} : vector<8x64xf32> to vector<1x64xf32>
    %103 = arith.addf %71, %101 : vector<1x64xf32>
    %104 = arith.maximumf %91, %103 : vector<1x64xf32>
    %105 = arith.subf %91, %104 : vector<1x64xf32>
    %106 = math.exp %105 : vector<1x64xf32>
    %107 = arith.subf %103, %104 : vector<1x64xf32>
    %108 = math.exp %107 : vector<1x64xf32>
    %109 = arith.mulf %106, %98 : vector<1x64xf32>
    %110 = arith.mulf %108, %102 : vector<1x64xf32>
    %111 = arith.addf %109, %110 : vector<1x64xf32>
    %112 = arith.mulf %106, %100 : vector<1x64xf32>
    %113 = arith.addf %112, %108 : vector<1x64xf32>
    %114 = tpu.reciprocal %113 {approx = true} : vector<1x64xf32> -> vector<1x64xf32>
    %115 = arith.mulf %111, %114 : vector<1x64xf32>
    %116 = arith.addf %91, %70 : vector<1x64xf32>
    %117 = arith.maximumf %116, %101 : vector<1x64xf32>
    %118 = arith.subf %116, %117 : vector<1x64xf32>
    %119 = math.exp %118 : vector<1x64xf32>
    %120 = arith.subf %101, %117 : vector<1x64xf32>
    %121 = math.exp %120 : vector<1x64xf32>
    %122 = arith.mulf %119, %98 : vector<1x64xf32>
    %123 = arith.mulf %121, %102 : vector<1x64xf32>
    %124 = arith.addf %122, %123 : vector<1x64xf32>
    %125 = arith.mulf %119, %100 : vector<1x64xf32>
    %126 = arith.addf %125, %121 : vector<1x64xf32>
    %127 = vector.extract_strided_slice %66 {offsets = [2, 0], sizes = [1, 64], strides = [1, 1]} : vector<8x64xf32> to vector<1x64xf32>
    %128 = vector.extract_strided_slice %69 {offsets = [2, 0], sizes = [1, 64], strides = [1, 1]} : vector<8x64xf32> to vector<1x64xf32>
    %129 = arith.addf %71, %127 : vector<1x64xf32>
    %130 = arith.maximumf %117, %129 : vector<1x64xf32>
    %131 = arith.subf %117, %130 : vector<1x64xf32>
    %132 = math.exp %131 : vector<1x64xf32>
    %133 = arith.subf %129, %130 : vector<1x64xf32>
    %134 = math.exp %133 : vector<1x64xf32>
    %135 = arith.mulf %132, %124 : vector<1x64xf32>
    %136 = arith.mulf %134, %128 : vector<1x64xf32>
    %137 = arith.addf %135, %136 : vector<1x64xf32>
    %138 = arith.mulf %132, %126 : vector<1x64xf32>
    %139 = arith.addf %138, %134 : vector<1x64xf32>
    %140 = tpu.reciprocal %139 {approx = true} : vector<1x64xf32> -> vector<1x64xf32>
    %141 = arith.mulf %137, %140 : vector<1x64xf32>
    %142 = arith.addf %117, %70 : vector<1x64xf32>
    %143 = arith.maximumf %142, %127 : vector<1x64xf32>
    %144 = arith.subf %142, %143 : vector<1x64xf32>
    %145 = math.exp %144 : vector<1x64xf32>
    %146 = arith.subf %127, %143 : vector<1x64xf32>
    %147 = math.exp %146 : vector<1x64xf32>
    %148 = arith.mulf %145, %124 : vector<1x64xf32>
    %149 = arith.mulf %147, %128 : vector<1x64xf32>
    %150 = arith.addf %148, %149 : vector<1x64xf32>
    %151 = arith.mulf %145, %126 : vector<1x64xf32>
    %152 = arith.addf %151, %147 : vector<1x64xf32>
    %153 = vector.extract_strided_slice %66 {offsets = [3, 0], sizes = [1, 64], strides = [1, 1]} : vector<8x64xf32> to vector<1x64xf32>
    %154 = vector.extract_strided_slice %69 {offsets = [3, 0], sizes = [1, 64], strides = [1, 1]} : vector<8x64xf32> to vector<1x64xf32>
    %155 = arith.addf %71, %153 : vector<1x64xf32>
    %156 = arith.maximumf %143, %155 : vector<1x64xf32>
    %157 = arith.subf %143, %156 : vector<1x64xf32>
    %158 = math.exp %157 : vector<1x64xf32>
    %159 = arith.subf %155, %156 : vector<1x64xf32>
    %160 = math.exp %159 : vector<1x64xf32>
    %161 = arith.mulf %158, %150 : vector<1x64xf32>
    %162 = arith.mulf %160, %154 : vector<1x64xf32>
    %163 = arith.addf %161, %162 : vector<1x64xf32>
    %164 = arith.mulf %158, %152 : vector<1x64xf32>
    %165 = arith.addf %164, %160 : vector<1x64xf32>
    %166 = tpu.reciprocal %165 {approx = true} : vector<1x64xf32> -> vector<1x64xf32>
    %167 = arith.mulf %163, %166 : vector<1x64xf32>
    %168 = arith.addf %143, %70 : vector<1x64xf32>
    %169 = arith.maximumf %168, %153 : vector<1x64xf32>
    %170 = arith.subf %168, %169 : vector<1x64xf32>
    %171 = math.exp %170 : vector<1x64xf32>
    %172 = arith.subf %153, %169 : vector<1x64xf32>
    %173 = math.exp %172 : vector<1x64xf32>
    %174 = arith.mulf %171, %150 : vector<1x64xf32>
    %175 = arith.mulf %173, %154 : vector<1x64xf32>
    %176 = arith.addf %174, %175 : vector<1x64xf32>
    %177 = arith.mulf %171, %152 : vector<1x64xf32>
    %178 = arith.addf %177, %173 : vector<1x64xf32>
    %179 = vector.extract_strided_slice %66 {offsets = [4, 0], sizes = [1, 64], strides = [1, 1]} : vector<8x64xf32> to vector<1x64xf32>
    %180 = vector.extract_strided_slice %69 {offsets = [4, 0], sizes = [1, 64], strides = [1, 1]} : vector<8x64xf32> to vector<1x64xf32>
    %181 = arith.addf %71, %179 : vector<1x64xf32>
    %182 = arith.maximumf %169, %181 : vector<1x64xf32>
    %183 = arith.subf %169, %182 : vector<1x64xf32>
    %184 = math.exp %183 : vector<1x64xf32>
    %185 = arith.subf %181, %182 : vector<1x64xf32>
    %186 = math.exp %185 : vector<1x64xf32>
    %187 = arith.mulf %184, %176 : vector<1x64xf32>
    %188 = arith.mulf %186, %180 : vector<1x64xf32>
    %189 = arith.addf %187, %188 : vector<1x64xf32>
    %190 = arith.mulf %184, %178 : vector<1x64xf32>
    %191 = arith.addf %190, %186 : vector<1x64xf32>
    %192 = tpu.reciprocal %191 {approx = true} : vector<1x64xf32> -> vector<1x64xf32>
    %193 = arith.mulf %189, %192 : vector<1x64xf32>
    %194 = arith.addf %169, %70 : vector<1x64xf32>
    %195 = arith.maximumf %194, %179 : vector<1x64xf32>
    %196 = arith.subf %194, %195 : vector<1x64xf32>
    %197 = math.exp %196 : vector<1x64xf32>
    %198 = arith.subf %179, %195 : vector<1x64xf32>
    %199 = math.exp %198 : vector<1x64xf32>
    %200 = arith.mulf %197, %176 : vector<1x64xf32>
    %201 = arith.mulf %199, %180 : vector<1x64xf32>
    %202 = arith.addf %200, %201 : vector<1x64xf32>
    %203 = arith.mulf %197, %178 : vector<1x64xf32>
    %204 = arith.addf %203, %199 : vector<1x64xf32>
    %205 = vector.extract_strided_slice %66 {offsets = [5, 0], sizes = [1, 64], strides = [1, 1]} : vector<8x64xf32> to vector<1x64xf32>
    %206 = vector.extract_strided_slice %69 {offsets = [5, 0], sizes = [1, 64], strides = [1, 1]} : vector<8x64xf32> to vector<1x64xf32>
    %207 = arith.addf %71, %205 : vector<1x64xf32>
    %208 = arith.maximumf %195, %207 : vector<1x64xf32>
    %209 = arith.subf %195, %208 : vector<1x64xf32>
    %210 = math.exp %209 : vector<1x64xf32>
    %211 = arith.subf %207, %208 : vector<1x64xf32>
    %212 = math.exp %211 : vector<1x64xf32>
    %213 = arith.mulf %210, %202 : vector<1x64xf32>
    %214 = arith.mulf %212, %206 : vector<1x64xf32>
    %215 = arith.addf %213, %214 : vector<1x64xf32>
    %216 = arith.mulf %210, %204 : vector<1x64xf32>
    %217 = arith.addf %216, %212 : vector<1x64xf32>
    %218 = tpu.reciprocal %217 {approx = true} : vector<1x64xf32> -> vector<1x64xf32>
    %219 = arith.mulf %215, %218 : vector<1x64xf32>
    %220 = arith.addf %195, %70 : vector<1x64xf32>
    %221 = arith.maximumf %220, %205 : vector<1x64xf32>
    %222 = arith.subf %220, %221 : vector<1x64xf32>
    %223 = math.exp %222 : vector<1x64xf32>
    %224 = arith.subf %205, %221 : vector<1x64xf32>
    %225 = math.exp %224 : vector<1x64xf32>
    %226 = arith.mulf %223, %202 : vector<1x64xf32>
    %227 = arith.mulf %225, %206 : vector<1x64xf32>
    %228 = arith.addf %226, %227 : vector<1x64xf32>
    %229 = arith.mulf %223, %204 : vector<1x64xf32>
    %230 = arith.addf %229, %225 : vector<1x64xf32>
    %231 = vector.extract_strided_slice %66 {offsets = [6, 0], sizes = [1, 64], strides = [1, 1]} : vector<8x64xf32> to vector<1x64xf32>
    %232 = vector.extract_strided_slice %69 {offsets = [6, 0], sizes = [1, 64], strides = [1, 1]} : vector<8x64xf32> to vector<1x64xf32>
    %233 = arith.addf %71, %231 : vector<1x64xf32>
    %234 = arith.maximumf %221, %233 : vector<1x64xf32>
    %235 = arith.subf %221, %234 : vector<1x64xf32>
    %236 = math.exp %235 : vector<1x64xf32>
    %237 = arith.subf %233, %234 : vector<1x64xf32>
    %238 = math.exp %237 : vector<1x64xf32>
    %239 = arith.mulf %236, %228 : vector<1x64xf32>
    %240 = arith.mulf %238, %232 : vector<1x64xf32>
    %241 = arith.addf %239, %240 : vector<1x64xf32>
    %242 = arith.mulf %236, %230 : vector<1x64xf32>
    %243 = arith.addf %242, %238 : vector<1x64xf32>
    %244 = tpu.reciprocal %243 {approx = true} : vector<1x64xf32> -> vector<1x64xf32>
    %245 = arith.mulf %241, %244 : vector<1x64xf32>
    %246 = arith.addf %221, %70 : vector<1x64xf32>
    %247 = arith.maximumf %246, %231 : vector<1x64xf32>
    %248 = arith.subf %246, %247 : vector<1x64xf32>
    %249 = math.exp %248 : vector<1x64xf32>
    %250 = arith.subf %231, %247 : vector<1x64xf32>
    %251 = math.exp %250 : vector<1x64xf32>
    %252 = arith.mulf %249, %228 : vector<1x64xf32>
    %253 = arith.mulf %251, %232 : vector<1x64xf32>
    %254 = arith.addf %252, %253 : vector<1x64xf32>
    %255 = arith.mulf %249, %230 : vector<1x64xf32>
    %256 = arith.addf %255, %251 : vector<1x64xf32>
    %257 = vector.extract_strided_slice %66 {offsets = [7, 0], sizes = [1, 64], strides = [1, 1]} : vector<8x64xf32> to vector<1x64xf32>
    %258 = vector.extract_strided_slice %69 {offsets = [7, 0], sizes = [1, 64], strides = [1, 1]} : vector<8x64xf32> to vector<1x64xf32>
    %259 = arith.addf %71, %257 : vector<1x64xf32>
    %260 = arith.maximumf %247, %259 : vector<1x64xf32>
    %261 = arith.subf %247, %260 : vector<1x64xf32>
    %262 = math.exp %261 : vector<1x64xf32>
    %263 = arith.subf %259, %260 : vector<1x64xf32>
    %264 = math.exp %263 : vector<1x64xf32>
    %265 = arith.mulf %262, %254 : vector<1x64xf32>
    %266 = arith.mulf %264, %258 : vector<1x64xf32>
    %267 = arith.addf %265, %266 : vector<1x64xf32>
    %268 = arith.mulf %262, %256 : vector<1x64xf32>
    %269 = arith.addf %268, %264 : vector<1x64xf32>
    %270 = tpu.reciprocal %269 {approx = true} : vector<1x64xf32> -> vector<1x64xf32>
    %271 = arith.mulf %267, %270 : vector<1x64xf32>
    %272 = tpu.concatenate %89, %115, %141, %167, %193, %219, %245, %271 in 0 : vector<1x64xf32>, vector<1x64xf32>, vector<1x64xf32>, vector<1x64xf32>, vector<1x64xf32>, vector<1x64xf32>, vector<1x64xf32>, vector<1x64xf32> -> vector<8x64xf32>
    %273 = vector.extract_strided_slice %272 {offsets = [0, 0], sizes = [8, 32], strides = [1, 1]} : vector<8x64xf32> to vector<8x32xf32>
    %274 = vector.extract_strided_slice %272 {offsets = [0, 32], sizes = [8, 32], strides = [1, 1]} : vector<8x64xf32> to vector<8x32xf32>
    %275 = tpu.concatenate %273, %274 in 0 : vector<8x32xf32>, vector<8x32xf32> -> vector<16x32xf32>
    %276 = arith.mulf %63, %275 : vector<16x32xf32>
    %cst_28 = arith.constant dense<0.000000e+00> : vector<16x32xf32>
    %277 = tpu.matmul %276, %7, %cst_28 {dimension_numbers = #tpu.dot_dimension_numbers<[1], [0], [0], [1], [0, 0, 1, 1], [], []>} : vector<16x32xf32>, vector<32x32xf32>, vector<16x32xf32> -> vector<16x32xf32>
    %278 = arith.addf %0, %277 : vector<16x32xf32>
    %cst_29 = arith.constant dense<0.000000e+00> : vector<16xf32>
    %279 = vector.multi_reduction <add>, %278, %cst_29 [1] : vector<16x32xf32> to vector<16xf32>
    %280 = vector.shape_cast %279 : vector<16xf32> to vector<16x1xf32>
    %cst_30 = arith.constant 3.200000e+01 : f32
    %281 = vector.broadcast %cst_30 : f32 to vector<16x1xf32>
    %282 = arith.divf %280, %281 : vector<16x1xf32>
    %283 = vector.broadcast %282 : vector<16x1xf32> to vector<16x32xf32>
    %284 = arith.subf %278, %283 : vector<16x32xf32>
    %285 = arith.mulf %284, %284 : vector<16x32xf32>
    %cst_31 = arith.constant dense<0.000000e+00> : vector<16xf32>
    %286 = vector.multi_reduction <add>, %285, %cst_31 [1] : vector<16x32xf32> to vector<16xf32>
    %287 = vector.shape_cast %286 : vector<16xf32> to vector<16x1xf32>
    %cst_32 = arith.constant 3.200000e+01 : f32
    %288 = vector.broadcast %cst_32 : f32 to vector<16x1xf32>
    %289 = arith.divf %287, %288 : vector<16x1xf32>
    %290 = vector.broadcast %282 : vector<16x1xf32> to vector<16x32xf32>
    %291 = arith.subf %278, %290 : vector<16x32xf32>
    %cst_33 = arith.constant 9.99999974E-6 : f32
    %292 = vector.broadcast %cst_33 : f32 to vector<16x1xf32>
    %293 = arith.addf %289, %292 : vector<16x1xf32>
    %294 = math.rsqrt %293 : vector<16x1xf32>
    %295 = vector.broadcast %294 : vector<16x1xf32> to vector<16x32xf32>
    %296 = arith.mulf %291, %295 : vector<16x32xf32>
    %297 = vector.broadcast %3 : vector<1x32xf32> to vector<16x32xf32>
    %298 = arith.mulf %296, %297 : vector<16x32xf32>
    %299 = vector.broadcast %4 : vector<1x32xf32> to vector<16x32xf32>
    %300 = arith.addf %298, %299 : vector<16x32xf32>
    %c1_i32_34 = arith.constant 1 : i32
    %301 = tpu.dynamic_rotate %300 by %c1_i32_34 dim 0 : vector<16x32xf32>, i32 -> vector<16x32xf32>
    %cst_35 = arith.constant 0.000000e+00 : f32
    %302 = vector.broadcast %cst_35 : f32 to vector<16x32xf32>
    %303 = arith.select %27, %302, %301 : vector<16x32xi1>, vector<16x32xf32>
    %304 = tpu.concatenate %300, %303 in 1 : vector<16x32xf32>, vector<16x32xf32> -> vector<16x64xf32>
    %c0_36 = arith.constant 0 : index
    %c0_37 = arith.constant 0 : index
    %305 = vector.load %arg3[%c0_36, %c0_37] : memref<64x160xf32, #tpu.memory_space<vmem>>, vector<64x160xf32>
    %cst_38 = arith.constant dense<0.000000e+00> : vector<16x160xf32>
    %306 = tpu.matmul %304, %305, %cst_38 {dimension_numbers = #tpu.dot_dimension_numbers<[1], [0], [0], [1], [0, 0, 1, 1], [], []>} : vector<16x64xf32>, vector<64x160xf32>, vector<16x160xf32> -> vector<16x160xf32>
    %307 = vector.extract_strided_slice %306 {offsets = [0, 0], sizes = [16, 128], strides = [1, 1]} : vector<16x160xf32> to vector<16x128xf32>
    %cst_39 = arith.constant 0.000000e+00 : f32
    %308 = vector.broadcast %cst_39 : f32 to vector<16x128xf32>
    %309 = arith.maximumf %307, %308 : vector<16x128xf32>
    %310 = arith.mulf %309, %309 : vector<16x128xf32>
    %311 = vector.extract_strided_slice %306 {offsets = [0, 128], sizes = [16, 32], strides = [1, 1]} : vector<16x160xf32> to vector<16x32xf32>
    %312 = arith.negf %311 : vector<16x32xf32>
    %313 = math.exp %312 : vector<16x32xf32>
    %cst_40 = arith.constant 1.000000e+00 : f32
    %314 = vector.broadcast %cst_40 : f32 to vector<16x32xf32>
    %315 = arith.addf %314, %313 : vector<16x32xf32>
    %316 = arith.divf %314, %315 : vector<16x32xf32>
    %cst_41 = arith.constant dense<0.000000e+00> : vector<16x32xf32>
    %317 = tpu.matmul %310, %8, %cst_41 {dimension_numbers = #tpu.dot_dimension_numbers<[1], [0], [0], [1], [0, 0, 1, 1], [], []>} : vector<16x128xf32>, vector<128x32xf32>, vector<16x32xf32> -> vector<16x32xf32>
    %318 = arith.mulf %316, %317 : vector<16x32xf32>
    %319 = arith.addf %278, %318 : vector<16x32xf32>
    %c0_42 = arith.constant 0 : index
    %c0_43 = arith.constant 0 : index
    %320 = vector.load %arg5[%c0_42, %c0_43] : memref<16x32xf32, #tpu.memory_space<vmem>>, vector<16x32xf32>
    tpu.vector_store %arg5[%c0_42, %c0_43], %319 {strides = array<i32>} : memref<16x32xf32, #tpu.memory_space<vmem>>, vector<16x32xf32>,
    return
  }
}

</mosaic_0001>

<llo_original>
// kernel: block_forward.1
$region0: #{block_forward.1}
  #allocation0 [shape = 'u32[]', space=smem, size = 0x4, offset = 0x4, fixed_abs, tag = 'smem constant byte address 0x4 - core index']
  #allocation1 [shape = 'u32[144,128]{1,0:T(1,128)}', space=vmem, size = 0x12000, scoped, tag = 'internal scratch']
  %s0 = inlined_call_operand.vmem [shape: f32[16,32], index: 0, kind: input, shape index: {}]
  %s1 = inlined_call_operand.vmem [shape: f32[6,32], index: 1, kind: input, shape index: {}]
  %s2 = inlined_call_operand.vmem [shape: f32[64,96], index: 2, kind: input, shape index: {}]
  %s3 = inlined_call_operand.vmem [shape: f32[64,160], index: 3, kind: input, shape index: {}]
  %s4 = inlined_call_operand.vmem [shape: f32[160,32], index: 4, kind: input, shape index: {}]
  %s5 = inlined_call_operand.hbm [shape: f32[16,32], index: 5, kind: output, shape index: {}]
  %s6 = sld [smem:[#allocation0]]
  $region30: #{block_forward.1} parent=0
    _
  %s8 = ssub.s32 1, %s6
  %s9 = scalar_select 0, %s8, %s6
  $region1: #{block_forward.1} parent=0
    #allocation2 [shape = 'u8[8192]{0}', space=vmem, size = 0x2000, scoped, tag = 'output window, operand 0, single buffered']
    #allocation3 [shape = 's32[1]{0}', space=sflag, size = 0x4, scoped, tag = 'scoped memory for block_forward.1']
    %10 = vsyncpa [#allocation3], 0
    // Predicated region
    $region2: #{block_forward.1} parent=1 // pred_check
      _
    $region3: #{block_forward.1} parent=1 // pred_check_branch
      %12 = sbr.rel (0) target = $region5
    $region4: #{block_forward.1} parent=1 // pred_region
      _
    $region5: #{block_forward.1} parent=1 // pred_fallthru
      _
    // Predicated region
    $region6: #{block_forward.1} parent=1 // pred_check
      _
    $region7: #{block_forward.1} parent=1 // pred_check_branch
      %14 = sbr.rel (0) target = $region9
    $region8: #{block_forward.1} parent=1 // pred_region
      _
    $region9: #{block_forward.1} parent=1 // pred_fallthru
      _
    // Predicated region
    $region10: #{block_forward.1} parent=1 // pred_check
      _
    $region11: #{block_forward.1} parent=1 // pred_check_branch
      %16 = sbr.rel (0) target = $region13
    $region12: #{block_forward.1} parent=1 // pred_region
      _
    $region13: #{block_forward.1} parent=1 // pred_fallthru
      _
    // Predicated region
    $region14: #{block_forward.1} parent=1 // pred_check
      _
    $region15: #{block_forward.1} parent=1 // pred_check_branch
      %18 = sbr.rel (0) target = $region17
    $region16: #{block_forward.1} parent=1 // pred_region
      _
    $region17: #{block_forward.1} parent=1 // pred_fallthru
      _
    // Predicated region
    $region18: #{block_forward.1} parent=1 // pred_check
      _
    $region19: #{block_forward.1} parent=1 // pred_check_branch
      %20 = sbr.rel (0) target = $region21
    $region20: #{block_forward.1} parent=1 // pred_region
      _
    $region21: #{block_forward.1} parent=1 // pred_fallthru
      _
    %v21 = vld [vmem:[%s0] sm:$0xff]
    %v22 = vld [vmem:[%s0 + $0x8] sm:$0xff]
    %v23 = vld [vmem:[%s1] sm:$0x1]
    %v24 = vld [vmem:[%s1 + $0x1] sm:$0x1]
    %v25 = vld [vmem:[%s1 + $0x2] sm:$0x1]
    %v26 = vld [vmem:[%s1 + $0x3] sm:$0x1]
    %v27 = vld [vmem:[%s1 + $0x4] sm:$0x1]
    %v28 = vld [vmem:[%s1 + $0x5] sm:$0x1]
    %v29 = vld [vmem:[%s4] sm:$0xff]
    %v30 = vld [vmem:[%s4 + $0x8] sm:$0xff]
    %v31 = vld [vmem:[%s4 + $0x10] sm:$0xff]
    %v32 = vld [vmem:[%s4 + $0x18] sm:$0xff]
    %v33 = vld [vmem:[%s4 + $0x20] sm:$0xff]
    %v34 = vld [vmem:[%s4 + $0x28] sm:$0xff]
    %v35 = vld [vmem:[%s4 + $0x30] sm:$0xff]
    %v36 = vld [vmem:[%s4 + $0x38] sm:$0xff]
    %v37 = vld [vmem:[%s4 + $0x40] sm:$0xff]
    %v38 = vld [vmem:[%s4 + $0x48] sm:$0xff]
    %v39 = vld [vmem:[%s4 + $0x50] sm:$0xff]
    %v40 = vld [vmem:[%s4 + $0x58] sm:$0xff]
    %v41 = vld [vmem:[%s4 + $0x60] sm:$0xff]
    %v42 = vld [vmem:[%s4 + $0x68] sm:$0xff]
    %v43 = vld [vmem:[%s4 + $0x70] sm:$0xff]
    %v44 = vld [vmem:[%s4 + $0x78] sm:$0xff]
    %v45 = vld [vmem:[%s4 + $0x80] sm:$0xff]
    %v46 = vld [vmem:[%s4 + $0x88] sm:$0xff]
    %v47 = vld [vmem:[%s4 + $0x90] sm:$0xff]
    %v48 = vld [vmem:[%s4 + $0x98] sm:$0xff]
    %v49 = vlaneseq
    %v50 = vshrl.u32 %v49, 7
    %v51 = vadd.s32 %v50, 8
    %vm52 = vcmp.lt.s32.totalorder %v50, 0
    %v53 = vsub.s32 0, %v50
    %v54 = vsel %vm52, %v53, %v50
    %v55 = vshrl.u32 %v54, 3
    %v56 = vand.u32 %v54, 7
    %v57 = vsub.s32 0, %v56
    %v58 = vsel %vm52, %v57, %v56
    %vm59 = vcmp.lt.s32.totalorder %v51, 0
    %v60 = vsub.s32 0, %v51
    %v61 = vsel %vm59, %v60, %v51
    %v62 = vshrl.u32 %v61, 3
    %v63 = vand.u32 %v61, 7
    %v64 = vsub.s32 0, %v63
    %v65 = vsel %vm59, %v64, %v63
    %vm66 = vcmp.ne.s32.totalorder %v58, 0
    %vm67 = vcmp.ne.s32.totalorder %v65, 0
    %vm68 = vcmp.lt.s32.totalorder %v58, 0
    %vm69 = vcmp.lt.s32.totalorder %v65, 0
    %vm70 = vmand %vm68, %vm66
    %vm71 = vmand %vm69, %vm67
    %v72 = vadd.s32 %v58, 8
    %v73 = vadd.s32 %v65, 8
    %v74 = vsel %vm70, %v72, %v58
    %v75 = vsel %vm71, %v73, %v65
    %vm76 = vcmp.eq.s32.totalorder %v74, 0
    %vm77 = vcmp.eq.s32.totalorder %v75, 0
    %vm78 = vcmask 261120
    %v79 = vsel %vm78, %v21, 0.0
    %80 = vadd.xlane.f32.xlu0 %v79
    %v81 = vpop.xlane.xlu0 %80
    %v82 = vsel %vm78, %v22, 0.0
    %83 = vadd.xlane.f32.xlu0 %v82
    %v84 = vpop.xlane.xlu0 %83
    %v85 = vrcp.pop 32.0
    %v86 = vmul.f32 %v81, %v85
    %v87 = vmul.f32 %v84, %v85
    %v88 = vsub.f32 %v21, %v86
    %v89 = vsub.f32 %v22, %v87
    %v90 = vmul.f32 %v88, %v88
    %v91 = vmul.f32 %v89, %v89
    %v92 = vsel %vm78, %v90, 0.0
    %93 = vadd.xlane.f32.xlu0 %v92
    %v94 = vpop.xlane.xlu0 %93
    %v95 = vsel %vm78, %v91, 0.0
    %96 = vadd.xlane.f32.xlu0 %v95
    %v97 = vpop.xlane.xlu0 %96
    %v98 = vmul.f32 %v94, %v85
    %v99 = vmul.f32 %v97, %v85
    %v100 = vadd.f32 %v98, 1e-05
    %v101 = vadd.f32 %v99, 1e-05
    %v102 = vrsqrt.pop %v100
    %v103 = vrsqrt.pop %v101
    %v104 = vmul.f32 %v88, %v102
    %v105 = vmul.f32 %v89, %v103
    %v106 = vlaneseq
    %v107 = vshrl.u32 %v106, 7
    %v108 = vsub.s32 0, %v107
    %v109 = vrot.slane %v23, %v108
    %v110 = vmul.f32 %v104, %v109
    %v111 = vmul.f32 %v105, %v109
    %v112 = vlaneseq
    %v113 = vshrl.u32 %v112, 7
    %v114 = vsub.s32 0, %v113
    %v115 = vrot.slane %v24, %v114
    %v116 = vadd.f32 %v110, %v115
    %v117 = vadd.f32 %v111, %v115
    %v118 = vrot.slane %v116, 7
    %v119 = vrot.slane %v117, 7
    %vm120 = vcmp.lt.s32.totalorder %v50, 1
    %v121 = vsel %vm120, %v118, %v119
    %v122 = vsel %vm120, %v119, %v118
    %v123 = vsel %vm76, 0.0, %v122
    %v124 = vsel %vm77, 0.0, %v121
    %127 = vrot.lane.b32.xlu0 %v123, 32
    %v128 = vpop.permute.xlu0 %127
    %129 = vrot.lane.b32.xlu0 %v124, 32
    %v130 = vpop.permute.xlu0 %129
    %v133 = vsel %vm78, %v116, %v128
    %v134 = vsel %vm78, %v117, %v130
    %v135 = vld [vmem:[%s2] sm:$0xff]
    %v136 = vld [vmem:[%s2 + $0x8] sm:$0xff]
    %v137 = vld [vmem:[%s2 + $0x10] sm:$0xff]
    %v138 = vld [vmem:[%s2 + $0x18] sm:$0xff]
    %v139 = vld [vmem:[%s2 + $0x20] sm:$0xff]
    %v140 = vld [vmem:[%s2 + $0x28] sm:$0xff]
    %v141 = vld [vmem:[%s2 + $0x30] sm:$0xff]
    %v142 = vld [vmem:[%s2 + $0x38] sm:$0xff]
    %vm143 = vcmask 523264
    %v145 = vsel %vm143, %v133, 0
    %v148 = vsel %vm143, %v134, 0
    %150 = vmatprep.subr.mxu0 0.0
    %151 = vmatpush1.msra.mxu0 0.0
    %152 = vmatprep.subr.mxu0 0.0
    %153 = vmatpush1.msra.mxu0 0.0
    %154 = vmatprep.subr.mxu0 0.0
    %155 = vmatpush1.msra.mxu0 0.0
    %156 = vmatprep.subr.mxu0 0.0
    %157 = vmatpush1.msra.mxu0 0.0
    %158 = vmatprep.subr.mxu0 0.0
    %159 = vmatpush1.msra.mxu0 0.0
    %160 = vmatprep.subr.mxu0 0.0
    %161 = vmatpush1.msra.mxu0 0.0
    %162 = vmatprep.subr.mxu0 0.0
    %163 = vmatpush1.msra.mxu0 0.0
    %164 = vmatprep.subr.mxu0 0.0
    %165 = vmatpush1.msra.mxu0 0.0
    %166 = vmatprep.subr.mxu0 0.0
    %167 = vmatpush1.msra.mxu0 %v142
    %168 = vmatprep.subr.mxu0 0.0
    %169 = vmatpush1.msra.mxu0 %v141
    %170 = vmatprep.subr.mxu0 0.0
    %171 = vmatpush1.msra.mxu0 %v140
    %172 = vmatprep.subr.mxu0 0.0
    %173 = vmatpush1.msra.mxu0 %v139
    %174 = vmatprep.subr.mxu0 0.0
    %175 = vmatpush1.msra.mxu0 %v138
    %176 = vmatprep.subr.mxu0 0.0
    %177 = vmatpush1.msra.mxu0 %v137
    %178 = vmatprep.subr.mxu0 0.0
    %179 = vmatpush1.msra.mxu0 %v136
    %180 = vmatprep.subr.mxu0 0.0
    %181 = vmatpush1.msra.mxu0 %v135
    %182 = vmatprep.subr.mxu0 0.0
    %183 = vmatpush2.msra.mxu0 0.0
    %184 = vmatprep.subr.mxu0 0.0
    %185 = vmatpush2.msra.mxu0 0.0
    %186 = vmatprep.subr.mxu0 0.0
    %187 = vmatpush2.msra.mxu0 0.0
    %188 = vmatprep.subr.mxu0 0.0
    %189 = vmatpush2.msra.mxu0 0.0
    %190 = vmatprep.subr.mxu0 0.0
    %191 = vmatpush2.msra.mxu0 0.0
    %192 = vmatprep.subr.mxu0 0.0
    %193 = vmatpush2.msra.mxu0 0.0
    %194 = vmatprep.subr.mxu0 0.0
    %195 = vmatpush2.msra.mxu0 0.0
    %196 = vmatprep.subr.mxu0 0.0
    %197 = vmatpush2.msra.mxu0 0.0
    %198 = vmatprep.subr.mxu0 0.0
    %199 = vmatpush2.msra.mxu0 0.0
    %200 = vmatprep.subr.mxu0 0.0
    %201 = vmatpush2.msra.mxu0 0.0
    %202 = vmatprep.subr.mxu0 0.0
    %203 = vmatpush2.msra.mxu0 0.0
    %204 = vmatprep.subr.mxu0 0.0
    %205 = vmatpush2.msra.mxu0 0.0
    %206 = vmatprep.subr.mxu0 0.0
    %207 = vmatpush2.msra.mxu0 0.0
    %208 = vmatprep.subr.mxu0 0.0
    %209 = vmatpush2.msra.mxu0 0.0
    %210 = vmatprep.subr.mxu0 0.0
    %211 = vmatpush2.msra.mxu0 0.0
    %212 = vmatprep.subr.mxu0 0.0
    %213 = vmatpush2.msra.mxu0 0.0
    %214 = vmatprep.mubr.f32.mxu0 0.0
    %215 = vmatmul.mubr.f32.gmra.mxu0 %v145
    %v216 = vpop.f32.mrf.mxu0
    %v217 = vadd.f32 0.0, %v216
    %v218 = vpop.f32.mrf.mxu0
    %219 = vmatprep.mubr.f32.mxu0 0.0
    %220 = vmatmul.mubr.f32.gmra.mxu0 %v148
    %v221 = vpop.f32.mrf.mxu0
    %v222 = vadd.f32 0.0, %v221
    %v223 = vpop.f32.mrf.mxu0
    %224 = vdwg.mxu0
    %v225 = vxor.u32 %v217, 2147483648
    %v226 = vxor.u32 %v222, 2147483648
    %v227 = vmul.f32 %v225, 1.442695
    %v228 = vpow.pop %v227
    %v229 = vmul.f32 %v226, 1.442695
    %v230 = vpow.pop %v229
    %v231 = vadd.f32 %v228, 1.0
    %v232 = vadd.f32 %v230, 1.0
    %v233 = vrcp.pop %v231
    %v234 = vmul.f32 1.0, %v233
    %v235 = vrcp.pop %v232
    %v236 = vmul.f32 1.0, %v235
    %238 = vrot.lane.b32.xlu0 %v222, 32
    %v239 = vpop.permute.xlu0 %238
    %v241 = vsel %vm78, %v217, %v239
    %243 = vrot.lane.b32.xlu0 %v217, 96
    %v244 = vpop.permute.xlu0 %243
    %v246 = vsel %vm78, %v244, %v222
    %248 = vrot.lane.b32.xlu0 %v27, 32
    %v249 = vpop.permute.xlu0 %248
    %v251 = vsel %vm78, %v27, %v249
    %253 = vrot.lane.b32.xlu0 %v28, 32
    %v254 = vpop.permute.xlu0 %253
    %v256 = vsel %vm78, %v28, %v254
    %v257 = vadd.f32 %v256, %v241
    %v258 = vmax.f32 %v257, -1e+38
    %v259 = vsub.f32 -1e+38, %v258
    %v260 = vmul.f32 %v259, 1.442695
    %v261 = vpow.pop %v260
    %v262 = vsub.f32 %v257, %v258
    %v263 = vmul.f32 %v262, 1.442695
    %v264 = vpow.pop %v263
    %v265 = vmul.f32 %v261, 0.0
    %v266 = vmul.f32 %v264, %v246
    %v267 = vadd.f32 %v265, %v266
    %v268 = vadd.f32 %v265, %v264
    %v269 = vrcp.pop %v268
    %v270 = vmul.f32 %v267, %v269
    %v271 = vadd.f32 %v251, -1e+38
    %v272 = vmax.f32 %v271, %v241
    %v273 = vsub.f32 %v271, %v272
    %v274 = vmul.f32 %v273, 1.442695
    %v275 = vpow.pop %v274
    %v276 = vsub.f32 %v241, %v272
    %v277 = vmul.f32 %v276, 1.442695
    %v278 = vpow.pop %v277
    %v279 = vmul.f32 %v275, 0.0
    %v280 = vmul.f32 %v278, %v246
    %v281 = vadd.f32 %v279, %v280
    %v282 = vadd.f32 %v279, %v278
    %v284 = vrot.slane %v241, 1
    %v286 = vadd.f32 %v256, %v284
    %v287 = vmax.f32 %v272, %v286
    %v288 = vsub.f32 %v272, %v287
    %v289 = vmul.f32 %v288, 1.442695
    %v290 = vpow.pop %v289
    %v291 = vsub.f32 %v286, %v287
    %v292 = vmul.f32 %v291, 1.442695
    %v293 = vpow.pop %v292
    %v294 = vmul.f32 %v290, %v281
    %v296 = vrot.slane %v246, 1
    %v298 = vmul.f32 %v293, %v296
    %v299 = vadd.f32 %v294, %v298
    %v300 = vmul.f32 %v290, %v282
    %v301 = vadd.f32 %v300, %v293
    %v302 = vrcp.pop %v301
    %v303 = vmul.f32 %v299, %v302
    %v304 = vadd.f32 %v272, %v251
    %v305 = vmax.f32 %v304, %v284
    %v306 = vsub.f32 %v304, %v305
    %v307 = vmul.f32 %v306, 1.442695
    %v308 = vpow.pop %v307
    %v310 = vrot.slane %v305, 7
    %v312 = vsub.f32 %v241, %v310
    %v313 = vmul.f32 %v312, 1.442695
    %v314 = vpow.pop %v313
    %v315 = vmul.f32 %v308, %v281
    %v316 = vmul.f32 %v314, %v246
    %v318 = vrot.slane %v316, 1
    %v320 = vadd.f32 %v315, %v318
    %v321 = vmul.f32 %v308, %v282
    %v323 = vrot.slane %v314, 1
    %v325 = vadd.f32 %v321, %v323
    %v326 = vrot.slane %v241, 2
    %v328 = vadd.f32 %v256, %v326
    %v329 = vmax.f32 %v305, %v328
    %v330 = vsub.f32 %v305, %v329
    %v331 = vmul.f32 %v330, 1.442695
    %v332 = vpow.pop %v331
    %v333 = vsub.f32 %v328, %v329
    %v334 = vmul.f32 %v333, 1.442695
    %v335 = vpow.pop %v334
    %v336 = vmul.f32 %v332, %v320
    %v337 = vrot.slane %v246, 2
    %v339 = vmul.f32 %v335, %v337
    %v340 = vadd.f32 %v336, %v339
    %v341 = vmul.f32 %v332, %v325
    %v342 = vadd.f32 %v341, %v335
    %v343 = vrcp.pop %v342
    %v344 = vmul.f32 %v340, %v343
    %v345 = vadd.f32 %v305, %v251
    %v346 = vmax.f32 %v345, %v326
    %v347 = vsub.f32 %v345, %v346
    %v348 = vmul.f32 %v347, 1.442695
    %v349 = vpow.pop %v348
    %v351 = vrot.slane %v346, 6
    %v353 = vsub.f32 %v241, %v351
    %v354 = vmul.f32 %v353, 1.442695
    %v355 = vpow.pop %v354
    %v356 = vmul.f32 %v349, %v320
    %v357 = vmul.f32 %v355, %v246
    %v359 = vrot.slane %v357, 2
    %v361 = vadd.f32 %v356, %v359
    %v362 = vmul.f32 %v349, %v325
    %v364 = vrot.slane %v355, 2
    %v366 = vadd.f32 %v362, %v364
    %v367 = vrot.slane %v241, 3
    %v369 = vadd.f32 %v256, %v367
    %v370 = vmax.f32 %v346, %v369
    %v371 = vsub.f32 %v346, %v370
    %v372 = vmul.f32 %v371, 1.442695
    %v373 = vpow.pop %v372
    %v374 = vsub.f32 %v369, %v370
    %v375 = vmul.f32 %v374, 1.442695
    %v376 = vpow.pop %v375
    %v377 = vmul.f32 %v373, %v361
    %v378 = vrot.slane %v246, 3
    %v380 = vmul.f32 %v376, %v378
    %v381 = vadd.f32 %v377, %v380
    %v382 = vmul.f32 %v373, %v366
    %v383 = vadd.f32 %v382, %v376
    %v384 = vrcp.pop %v383
    %v385 = vmul.f32 %v381, %v384
    %v386 = vadd.f32 %v346, %v251
    %v387 = vmax.f32 %v386, %v367
    %v388 = vsub.f32 %v386, %v387
    %v389 = vmul.f32 %v388, 1.442695
    %v390 = vpow.pop %v389
    %v392 = vrot.slane %v387, 5
    %v394 = vsub.f32 %v241, %v392
    %v395 = vmul.f32 %v394, 1.442695
    %v396 = vpow.pop %v395
    %v397 = vmul.f32 %v390, %v361
    %v398 = vmul.f32 %v396, %v246
    %v400 = vrot.slane %v398, 3
    %v402 = vadd.f32 %v397, %v400
    %v403 = vmul.f32 %v390, %v366
    %v405 = vrot.slane %v396, 3
    %v407 = vadd.f32 %v403, %v405
    %v408 = vrot.slane %v241, 4
    %v410 = vadd.f32 %v256, %v408
    %v411 = vmax.f32 %v387, %v410
    %v412 = vsub.f32 %v387, %v411
    %v413 = vmul.f32 %v412, 1.442695
    %v414 = vpow.pop %v413
    %v415 = vsub.f32 %v410, %v411
    %v416 = vmul.f32 %v415, 1.442695
    %v417 = vpow.pop %v416
    %v418 = vmul.f32 %v414, %v402
    %v419 = vrot.slane %v246, 4
    %v421 = vmul.f32 %v417, %v419
    %v422 = vadd.f32 %v418, %v421
    %v423 = vmul.f32 %v414, %v407
    %v424 = vadd.f32 %v423, %v417
    %v425 = vrcp.pop %v424
    %v426 = vmul.f32 %v422, %v425
    %v427 = vadd.f32 %v387, %v251
    %v428 = vmax.f32 %v427, %v408
    %v429 = vsub.f32 %v427, %v428
    %v430 = vmul.f32 %v429, 1.442695
    %v431 = vpow.pop %v430
    %v433 = vrot.slane %v428, 4
    %v435 = vsub.f32 %v241, %v433
    %v436 = vmul.f32 %v435, 1.442695
    %v437 = vpow.pop %v436
    %v438 = vmul.f32 %v431, %v402
    %v439 = vmul.f32 %v437, %v246
    %v441 = vrot.slane %v439, 4
    %v443 = vadd.f32 %v438, %v441
    %v444 = vmul.f32 %v431, %v407
    %v446 = vrot.slane %v437, 4
    %v448 = vadd.f32 %v444, %v446
    %v449 = vrot.slane %v241, 5
    %v451 = vadd.f32 %v256, %v449
    %v452 = vmax.f32 %v428, %v451
    %v453 = vsub.f32 %v428, %v452
    %v454 = vmul.f32 %v453, 1.442695
    %v455 = vpow.pop %v454
    %v456 = vsub.f32 %v451, %v452
    %v457 = vmul.f32 %v456, 1.442695
    %v458 = vpow.pop %v457
    %v459 = vmul.f32 %v455, %v443
    %v460 = vrot.slane %v246, 5
    %v462 = vmul.f32 %v458, %v460
    %v463 = vadd.f32 %v459, %v462
    %v464 = vmul.f32 %v455, %v448
    %v465 = vadd.f32 %v464, %v458
    %v466 = vrcp.pop %v465
    %v467 = vmul.f32 %v463, %v466
    %v468 = vadd.f32 %v428, %v251
    %v469 = vmax.f32 %v468, %v449
    %v470 = vsub.f32 %v468, %v469
    %v471 = vmul.f32 %v470, 1.442695
    %v472 = vpow.pop %v471
    %v474 = vrot.slane %v469, 3
    %v476 = vsub.f32 %v241, %v474
    %v477 = vmul.f32 %v476, 1.442695
    %v478 = vpow.pop %v477
    %v479 = vmul.f32 %v472, %v443
    %v480 = vmul.f32 %v478, %v246
    %v482 = vrot.slane %v480, 5
    %v484 = vadd.f32 %v479, %v482
    %v485 = vmul.f32 %v472, %v448
    %v487 = vrot.slane %v478, 5
    %v489 = vadd.f32 %v485, %v487
    %v490 = vrot.slane %v241, 6
    %v492 = vadd.f32 %v256, %v490
    %v493 = vmax.f32 %v469, %v492
    %v494 = vsub.f32 %v469, %v493
    %v495 = vmul.f32 %v494, 1.442695
    %v496 = vpow.pop %v495
    %v497 = vsub.f32 %v492, %v493
    %v498 = vmul.f32 %v497, 1.442695
    %v499 = vpow.pop %v498
    %v500 = vmul.f32 %v496, %v484
    %v501 = vrot.slane %v246, 6
    %v503 = vmul.f32 %v499, %v501
    %v504 = vadd.f32 %v500, %v503
    %v505 = vmul.f32 %v496, %v489
    %v506 = vadd.f32 %v505, %v499
    %v507 = vrcp.pop %v506
    %v508 = vmul.f32 %v504, %v507
    %v509 = vadd.f32 %v469, %v251
    %v510 = vmax.f32 %v509, %v490
    %v511 = vsub.f32 %v509, %v510
    %v512 = vmul.f32 %v511, 1.442695
    %v513 = vpow.pop %v512
    %v515 = vrot.slane %v510, 2
    %v517 = vsub.f32 %v241, %v515
    %v518 = vmul.f32 %v517, 1.442695
    %v519 = vpow.pop %v518
    %v520 = vmul.f32 %v513, %v484
    %v521 = vmul.f32 %v519, %v246
    %v523 = vrot.slane %v521, 6
    %v525 = vadd.f32 %v520, %v523
    %v526 = vmul.f32 %v513, %v489
    %v528 = vrot.slane %v519, 6
    %v530 = vadd.f32 %v526, %v528
    %v531 = vrot.slane %v241, 7
    %v533 = vadd.f32 %v256, %v531
    %v534 = vmax.f32 %v510, %v533
    %v535 = vsub.f32 %v510, %v534
    %v536 = vmul.f32 %v535, 1.442695
    %v537 = vpow.pop %v536
    %v538 = vsub.f32 %v533, %v534
    %v539 = vmul.f32 %v538, 1.442695
    %v540 = vpow.pop %v539
    %v541 = vmul.f32 %v537, %v525
    %v542 = vrot.slane %v246, 7
    %v544 = vmul.f32 %v540, %v542
    %v545 = vadd.f32 %v541, %v544
    %v546 = vmul.f32 %v537, %v530
    %v547 = vadd.f32 %v546, %v540
    %v548 = vrcp.pop %v547
    %v549 = vmul.f32 %v545, %v548
    %v551 = vrot.slane %v303, 7
    %v554 = vrot.slane %v344, 6
    %v557 = vrot.slane %v385, 5
    %v560 = vrot.slane %v426, 4
    %v563 = vrot.slane %v467, 3
    %v566 = vrot.slane %v508, 2
    %v569 = vrot.slane %v549, 1
    %vm571 = vcmask 1040384
    %v572 = vsel %vm571, %v270, %v551
    %vm573 = vcmask 1041408
    %v574 = vsel %vm573, %v572, %v554
    %vm575 = vcmask 1042432
    %v576 = vsel %vm575, %v574, %v557
    %vm577 = vcmask 1043456
    %v578 = vsel %vm577, %v576, %v560
    %vm579 = vcmask 1044480
    %v580 = vsel %vm579, %v578, %v563
    %vm581 = vcmask 1045504
    %v582 = vsel %vm581, %v580, %v566
    %vm583 = vcmask 1046528
    %v584 = vsel %vm583, %v582, %v569
    %586 = vrot.lane.b32.xlu0 %v584, 96
    %v587 = vpop.permute.xlu0 %586
    %588 = vrot.lane.b32.xlu0 %v584, 64
    %v589 = vpop.permute.xlu0 %588
    %590 = vrot.lane.b32.xlu0 %v587, 64
    %v591 = vpop.permute.xlu0 %590
    %v594 = vmul.f32 %v234, %v589
    %v595 = vmul.f32 %v236, %v591
    %598 = vrot.lane.b32.xlu0 %v594, 64
    %v599 = vpop.permute.xlu0 %598
    %600 = vrot.lane.b32.xlu0 %v595, 64
    %v601 = vpop.permute.xlu0 %600
    %v602 = vsel %vm78, %v599, 0
    %v604 = vsel %vm78, %v601, 0
    %606 = vmatprep.subr.mxu0 0.0
    %607 = vmatpush1.msra.mxu0 0.0
    %608 = vmatprep.subr.mxu0 0.0
    %609 = vmatpush1.msra.mxu0 0.0
    %610 = vmatprep.subr.mxu0 0.0
    %611 = vmatpush1.msra.mxu0 0.0
    %612 = vmatprep.subr.mxu0 0.0
    %613 = vmatpush1.msra.mxu0 0.0
    %614 = vmatprep.subr.mxu0 0.0
    %615 = vmatpush1.msra.mxu0 0.0
    %616 = vmatprep.subr.mxu0 0.0
    %617 = vmatpush1.msra.mxu0 0.0
    %618 = vmatprep.subr.mxu0 0.0
    %619 = vmatpush1.msra.mxu0 0.0
    %620 = vmatprep.subr.mxu0 0.0
    %621 = vmatpush1.msra.mxu0 0.0
    %622 = vmatprep.subr.mxu0 0.0
    %623 = vmatpush1.msra.mxu0 0.0
    %624 = vmatprep.subr.mxu0 0.0
    %625 = vmatpush1.msra.mxu0 0.0
    %626 = vmatprep.subr.mxu0 0.0
    %627 = vmatpush1.msra.mxu0 0.0
    %628 = vmatprep.subr.mxu0 0.0
    %629 = vmatpush1.msra.mxu0 0.0
    %630 = vmatprep.subr.mxu0 0.0
    %631 = vmatpush1.msra.mxu0 %v32
    %632 = vmatprep.subr.mxu0 0.0
    %633 = vmatpush1.msra.mxu0 %v31
    %634 = vmatprep.subr.mxu0 0.0
    %635 = vmatpush1.msra.mxu0 %v30
    %636 = vmatprep.subr.mxu0 0.0
    %637 = vmatpush1.msra.mxu0 %v29
    %638 = vmatprep.subr.mxu0 0.0
    %639 = vmatpush2.msra.mxu0 0.0
    %640 = vmatprep.subr.mxu0 0.0
    %641 = vmatpush2.msra.mxu0 0.0
    %642 = vmatprep.subr.mxu0 0.0
    %643 = vmatpush2.msra.mxu0 0.0
    %644 = vmatprep.subr.mxu0 0.0
    %645 = vmatpush2.msra.mxu0 0.0
    %646 = vmatprep.subr.mxu0 0.0
    %647 = vmatpush2.msra.mxu0 0.0
    %648 = vmatprep.subr.mxu0 0.0
    %649 = vmatpush2.msra.mxu0 0.0
    %650 = vmatprep.subr.mxu0 0.0
    %651 = vmatpush2.msra.mxu0 0.0
    %652 = vmatprep.subr.mxu0 0.0
    %653 = vmatpush2.msra.mxu0 0.0
    %654 = vmatprep.subr.mxu0 0.0
    %655 = vmatpush2.msra.mxu0 0.0
    %656 = vmatprep.subr.mxu0 0.0
    %657 = vmatpush2.msra.mxu0 0.0
    %658 = vmatprep.subr.mxu0 0.0
    %659 = vmatpush2.msra.mxu0 0.0
    %660 = vmatprep.subr.mxu0 0.0
    %661 = vmatpush2.msra.mxu0 0.0
    %662 = vmatprep.subr.mxu0 0.0
    %663 = vmatpush2.msra.mxu0 0.0
    %664 = vmatprep.subr.mxu0 0.0
    %665 = vmatpush2.msra.mxu0 0.0
    %666 = vmatprep.subr.mxu0 0.0
    %667 = vmatpush2.msra.mxu0 0.0
    %668 = vmatprep.subr.mxu0 0.0
    %669 = vmatpush2.msra.mxu0 0.0
    %670 = vmatprep.mubr.f32.mxu0 0.0
    %671 = vmatmul.mubr.f32.gmra.mxu0 %v602
    %v672 = vpop.f32.mrf.mxu0
    %v673 = vadd.f32 0.0, %v672
    %v674 = vpop.f32.mrf.mxu0
    %675 = vmatprep.mubr.f32.mxu0 0.0
    %676 = vmatmul.mubr.f32.gmra.mxu0 %v604
    %v677 = vpop.f32.mrf.mxu0
    %v678 = vadd.f32 0.0, %v677
    %v679 = vpop.f32.mrf.mxu0
    %680 = vdwg.mxu0
    %v681 = vadd.f32 %v21, %v673
    %v682 = vadd.f32 %v22, %v678
    %v683 = vsel %vm78, %v681, 0.0
    %684 = vadd.xlane.f32.xlu0 %v683
    %v685 = vpop.xlane.xlu0 %684
    %v686 = vsel %vm78, %v682, 0.0
    %687 = vadd.xlane.f32.xlu0 %v686
    %v688 = vpop.xlane.xlu0 %687
    %v689 = vmul.f32 %v685, %v85
    %v690 = vmul.f32 %v688, %v85
    %v691 = vsub.f32 %v681, %v689
    %v692 = vsub.f32 %v682, %v690
    %v693 = vmul.f32 %v691, %v691
    %v694 = vmul.f32 %v692, %v692
    %v695 = vsel %vm78, %v693, 0.0
    %696 = vadd.xlane.f32.xlu0 %v695
    %v697 = vpop.xlane.xlu0 %696
    %v698 = vsel %vm78, %v694, 0.0
    %699 = vadd.xlane.f32.xlu0 %v698
    %v700 = vpop.xlane.xlu0 %699
    %v701 = vmul.f32 %v697, %v85
    %v702 = vmul.f32 %v700, %v85
    %v703 = vadd.f32 %v701, 1e-05
    %v704 = vadd.f32 %v702, 1e-05
    %v705 = vrsqrt.pop %v703
    %v706 = vrsqrt.pop %v704
    %v707 = vmul.f32 %v691, %v705
    %v708 = vmul.f32 %v692, %v706
    %v709 = vlaneseq
    %v710 = vshrl.u32 %v709, 7
    %v711 = vsub.s32 0, %v710
    %v712 = vrot.slane %v25, %v711
    %v713 = vmul.f32 %v707, %v712
    %v714 = vmul.f32 %v708, %v712
    %v715 = vlaneseq
    %v716 = vshrl.u32 %v715, 7
    %v717 = vsub.s32 0, %v716
    %v718 = vrot.slane %v26, %v717
    %v719 = vadd.f32 %v713, %v718
    %v720 = vadd.f32 %v714, %v718
    %v721 = vrot.slane %v719, 7
    %v722 = vrot.slane %v720, 7
    %v723 = vsel %vm120, %v721, %v722
    %v724 = vsel %vm120, %v722, %v721
    %v725 = vsel %vm76, 0.0, %v724
    %v726 = vsel %vm77, 0.0, %v723
    %729 = vrot.lane.b32.xlu0 %v725, 32
    %v730 = vpop.permute.xlu0 %729
    %731 = vrot.lane.b32.xlu0 %v726, 32
    %v732 = vpop.permute.xlu0 %731
    %v735 = vsel %vm78, %v719, %v730
    %v736 = vsel %vm78, %v720, %v732
    %v737 = vld [vmem:[%s3] sm:$0xff]
    %v738 = vld [vmem:[%s3 + $0x8] sm:$0xff]
    %v739 = vld [vmem:[%s3 + $0x10] sm:$0xff]
    %v740 = vld [vmem:[%s3 + $0x18] sm:$0xff]
    %v741 = vld [vmem:[%s3 + $0x20] sm:$0xff]
    %v742 = vld [vmem:[%s3 + $0x28] sm:$0xff]
    %v743 = vld [vmem:[%s3 + $0x30] sm:$0xff]
    %v744 = vld [vmem:[%s3 + $0x38] sm:$0xff]
    %v745 = vld [vmem:[%s3 + $0x40] sm:$0xff]
    %v746 = vld [vmem:[%s3 + $0x48] sm:$0xff]
    %v747 = vld [vmem:[%s3 + $0x50] sm:$0xff]
    %v748 = vld [vmem:[%s3 + $0x58] sm:$0xff]
    %v749 = vld [vmem:[%s3 + $0x60] sm:$0xff]
    %v750 = vld [vmem:[%s3 + $0x68] sm:$0xff]
    %v751 = vld [vmem:[%s3 + $0x70] sm:$0xff]
    %v752 = vld [vmem:[%s3 + $0x78] sm:$0xff]
    %v754 = vsel %vm143, %v735, 0
    %v757 = vsel %vm143, %v736, 0
    %759 = vmatprep.subr.mxu0 0.0
    %760 = vmatpush1.msra.mxu0 0.0
    %761 = vmatprep.subr.mxu0 0.0
    %762 = vmatpush1.msra.mxu0 0.0
    %763 = vmatprep.subr.mxu0 0.0
    %764 = vmatpush1.msra.mxu0 0.0
    %765 = vmatprep.subr.mxu0 0.0
    %766 = vmatpush1.msra.mxu0 0.0
    %767 = vmatprep.subr.mxu0 0.0
    %768 = vmatpush1.msra.mxu0 0.0
    %769 = vmatprep.subr.mxu0 0.0
    %770 = vmatpush1.msra.mxu0 0.0
    %771 = vmatprep.subr.mxu0 0.0
    %772 = vmatpush1.msra.mxu0 0.0
    %773 = vmatprep.subr.mxu0 0.0
    %774 = vmatpush1.msra.mxu0 0.0
    %775 = vmatprep.subr.mxu0 %v752
    %776 = vmatpush1.msra.mxu0 %v751
    %777 = vmatprep.subr.mxu0 %v750
    %778 = vmatpush1.msra.mxu0 %v749
    %779 = vmatprep.subr.mxu0 %v748
    %780 = vmatpush1.msra.mxu0 %v747
    %781 = vmatprep.subr.mxu0 %v746
    %782 = vmatpush1.msra.mxu0 %v745
    %783 = vmatprep.subr.mxu0 %v744
    %784 = vmatpush1.msra.mxu0 %v743
    %785 = vmatprep.subr.mxu0 %v742
    %786 = vmatpush1.msra.mxu0 %v741
    %787 = vmatprep.subr.mxu0 %v740
    %788 = vmatpush1.msra.mxu0 %v739
    %789 = vmatprep.subr.mxu0 %v738
    %790 = vmatpush1.msra.mxu0 %v737
    %791 = vmatprep.subr.mxu0 0.0
    %792 = vmatpush2.msra.mxu0 0.0
    %793 = vmatprep.subr.mxu0 0.0
    %794 = vmatpush2.msra.mxu0 0.0
    %795 = vmatprep.subr.mxu0 0.0
    %796 = vmatpush2.msra.mxu0 0.0
    %797 = vmatprep.subr.mxu0 0.0
    %798 = vmatpush2.msra.mxu0 0.0
    %799 = vmatprep.subr.mxu0 0.0
    %800 = vmatpush2.msra.mxu0 0.0
    %801 = vmatprep.subr.mxu0 0.0
    %802 = vmatpush2.msra.mxu0 0.0
    %803 = vmatprep.subr.mxu0 0.0
    %804 = vmatpush2.msra.mxu0 0.0
    %805 = vmatprep.subr.mxu0 0.0
    %806 = vmatpush2.msra.mxu0 0.0
    %807 = vmatprep.subr.mxu0 0.0
    %808 = vmatpush2.msra.mxu0 0.0
    %809 = vmatprep.subr.mxu0 0.0
    %810 = vmatpush2.msra.mxu0 0.0
    %811 = vmatprep.subr.mxu0 0.0
    %812 = vmatpush2.msra.mxu0 0.0
    %813 = vmatprep.subr.mxu0 0.0
    %814 = vmatpush2.msra.mxu0 0.0
    %815 = vmatprep.subr.mxu0 0.0
    %816 = vmatpush2.msra.mxu0 0.0
    %817 = vmatprep.subr.mxu0 0.0
    %818 = vmatpush2.msra.mxu0 0.0
    %819 = vmatprep.subr.mxu0 0.0
    %820 = vmatpush2.msra.mxu0 0.0
    %821 = vmatprep.subr.mxu0 0.0
    %822 = vmatpush2.msra.mxu0 0.0
    %823 = vmatprep.mubr.f32.mxu0 0.0
    %824 = vmatmul.mubr.f32.gmra.mxu0 %v754
    %v825 = vpop.f32.mrf.mxu0
    %v826 = vadd.f32 0.0, %v825
    %v827 = vpop.f32.mrf.mxu0
    %v828 = vadd.f32 0.0, %v827
    %829 = vmatprep.mubr.f32.mxu0 0.0
    %830 = vmatmul.mubr.f32.gmra.mxu0 %v757
    %v831 = vpop.f32.mrf.mxu0
    %v832 = vadd.f32 0.0, %v831
    %v833 = vpop.f32.mrf.mxu0
    %v834 = vadd.f32 0.0, %v833
    %835 = vdwg.mxu0
    %v836 = vmax.f32 %v826, 0.0
    %v837 = vmax.f32 %v832, 0.0
    %v838 = vmul.f32 %v836, %v836
    %v839 = vmul.f32 %v837, %v837
    %v840 = vxor.u32 %v828, 2147483648
    %v841 = vxor.u32 %v834, 2147483648
    %v842 = vmul.f32 %v840, 1.442695
    %v843 = vpow.pop %v842
    %v844 = vmul.f32 %v841, 1.442695
    %v845 = vpow.pop %v844
    %v846 = vadd.f32 %v843, 1.0
    %v847 = vadd.f32 %v845, 1.0
    %v848 = vrcp.pop %v846
    %v849 = vmul.f32 1.0, %v848
    %v850 = vrcp.pop %v847
    %v851 = vmul.f32 1.0, %v850
    %852 = vmatprep.subr.mxu0 0.0
    %853 = vmatpush1.msra.mxu0 %v48
    %854 = vmatprep.subr.mxu0 0.0
    %855 = vmatpush1.msra.mxu0 %v47
    %856 = vmatprep.subr.mxu0 0.0
    %857 = vmatpush1.msra.mxu0 %v46
    %858 = vmatprep.subr.mxu0 0.0
    %859 = vmatpush1.msra.mxu0 %v45
    %860 = vmatprep.subr.mxu0 0.0
    %861 = vmatpush1.msra.mxu0 %v44
    %862 = vmatprep.subr.mxu0 0.0
    %863 = vmatpush1.msra.mxu0 %v43
    %864 = vmatprep.subr.mxu0 0.0
    %865 = vmatpush1.msra.mxu0 %v42
    %866 = vmatprep.subr.mxu0 0.0
    %867 = vmatpush1.msra.mxu0 %v41
    %868 = vmatprep.subr.mxu0 0.0
    %869 = vmatpush1.msra.mxu0 %v40
    %870 = vmatprep.subr.mxu0 0.0
    %871 = vmatpush1.msra.mxu0 %v39
    %872 = vmatprep.subr.mxu0 0.0
    %873 = vmatpush1.msra.mxu0 %v38
    %874 = vmatprep.subr.mxu0 0.0
    %875 = vmatpush1.msra.mxu0 %v37
    %876 = vmatprep.subr.mxu0 0.0
    %877 = vmatpush1.msra.mxu0 %v36
    %878 = vmatprep.subr.mxu0 0.0
    %879 = vmatpush1.msra.mxu0 %v35
    %880 = vmatprep.subr.mxu0 0.0
    %881 = vmatpush1.msra.mxu0 %v34
    %882 = vmatprep.subr.mxu0 0.0
    %883 = vmatpush1.msra.mxu0 %v33
    %884 = vmatprep.subr.mxu0 0.0
    %885 = vmatpush2.msra.mxu0 0.0
    %886 = vmatprep.subr.mxu0 0.0
    %887 = vmatpush2.msra.mxu0 0.0
    %888 = vmatprep.subr.mxu0 0.0
    %889 = vmatpush2.msra.mxu0 0.0
    %890 = vmatprep.subr.mxu0 0.0
    %891 = vmatpush2.msra.mxu0 0.0
    %892 = vmatprep.subr.mxu0 0.0
    %893 = vmatpush2.msra.mxu0 0.0
    %894 = vmatprep.subr.mxu0 0.0
    %895 = vmatpush2.msra.mxu0 0.0
    %896 = vmatprep.subr.mxu0 0.0
    %897 = vmatpush2.msra.mxu0 0.0
    %898 = vmatprep.subr.mxu0 0.0
    %899 = vmatpush2.msra.mxu0 0.0
    %900 = vmatprep.subr.mxu0 0.0
    %901 = vmatpush2.msra.mxu0 0.0
    %902 = vmatprep.subr.mxu0 0.0
    %903 = vmatpush2.msra.mxu0 0.0
    %904 = vmatprep.subr.mxu0 0.0
    %905 = vmatpush2.msra.mxu0 0.0
    %906 = vmatprep.subr.mxu0 0.0
    %907 = vmatpush2.msra.mxu0 0.0
    %908 = vmatprep.subr.mxu0 0.0
    %909 = vmatpush2.msra.mxu0 0.0
    %910 = vmatprep.subr.mxu0 0.0
    %911 = vmatpush2.msra.mxu0 0.0
    %912 = vmatprep.subr.mxu0 0.0
    %913 = vmatpush2.msra.mxu0 0.0
    %914 = vmatprep.subr.mxu0 0.0
    %915 = vmatpush2.msra.mxu0 0.0
    %916 = vmatprep.mubr.f32.mxu0 0.0
    %917 = vmatmul.mubr.f32.gmra.mxu0 %v838
    %v918 = vpop.f32.mrf.mxu0
    %v919 = vadd.f32 0.0, %v918
    %v920 = vpop.f32.mrf.mxu0
    %921 = vmatprep.mubr.f32.mxu0 0.0
    %922 = vmatmul.mubr.f32.gmra.mxu0 %v839
    %v923 = vpop.f32.mrf.mxu0
    %v924 = vadd.f32 0.0, %v923
    %v925 = vpop.f32.mrf.mxu0
    %926 = vdwg.mxu0
    %v927 = vmul.f32 %v849, %v919
    %v928 = vmul.f32 %v851, %v924
    %v929 = vadd.f32 %v681, %v927
    %v930 = vadd.f32 %v682, %v928
    %931 = vst.msk [vmem:[#allocation2] sm:$0xff] %vm78, %v929
    %932 = vst.msk [vmem:[#allocation2 + $0x8] sm:$0xff] %vm78, %v930
    // Predicated region
    $region22: #{block_forward.1} parent=1 // pred_check
      _
    $region23: #{block_forward.1} parent=1 // pred_check_branch
      %934 = sbr.rel (0) target = $region25
    $region24: #{block_forward.1} parent=1 // pred_region
      %s936 = ssub.s32 256, 256
      %937 = vsyncadd [#allocation3], %s936
      %s938 = sshll.u32 [#allocation2], 4
      %s939 = int_to_ptr.vmem [resolvable:$true] %s938
      %944 = dma.vmem_to_hbm [thread:$0]  %s939, 256, %s5, [#allocation3], 128, 128, 8
    $region25: #{block_forward.1} parent=1 // pred_fallthru
      _
    // Predicated region
    $region26: #{block_forward.1} parent=1 // pred_check
      _
    $region27: #{block_forward.1} parent=1 // pred_check_branch
      %946 = sbr.rel (0) target = $region29
    $region28: #{block_forward.1} parent=1 // pred_region
      %947 = dma.done [#allocation3], 256
    $region29: #{block_forward.1} parent=1 // pred_fallthru
      _
    %948 = vsyncpa [#allocation3], 1

</llo_original>
